<compile_context>
chip_gen: v6e
topology: v6e:2x2x1
jax: 0.10.0
libtpu: 0.0.40
codegen_flags: <defaults>
</compile_context>

<pallas_src>
import functools

import jax
import jax.numpy as jnp
from jax import lax
from jax.experimental import pallas as pl
from jax.experimental.pallas import tpu as pltpu

WIDTH = 32        # hidden width
N_INPUTS = 4      # len(iset)
N_OUTPUTS = 1
M_COL = 0         # column index of 'm' in iset (bounds depend on m only)
LOWER_FRAC = 0.1  # lower_bound(m) = 0.1 * m ; upper_bound(m) = m


def _round_up(n, m):
    return ((n + m - 1) // m) * m


def _sigmoid(v):
    # tanh form: a single EUP push per activation (vs exp + reciprocal),
    # exact, and numerically stable for all v (no inf intermediate).
    return 0.5 * (1.0 + jnp.tanh(0.5 * v))


def _silu(v):
    return v * _sigmoid(v)


def block_policy_kernel(xt_ref, w1_ref, b1_ref, w2_ref, b2_ref,
                        wo_ref, bo_ref, o_ref, *, chunk):
    # Tiny weights/biases: load once per grid step, live in vregs across the
    # chunk loop (constant index maps keep them resident in VMEM across steps).
    w1 = w1_ref[...]              # (WIDTH, N_INPUTS)   torch (out, in)
    b1 = b1_ref[...]              # (WIDTH, 1)
    w2 = w2_ref[...]              # (WIDTH, WIDTH)
    b2 = b2_ref[...]              # (WIDTH, 1)
    wo = wo_ref[...]              # (WIDTH, N_OUTPUTS)  stored (in, out)
    bo = bo_ref[0, 0]             # SMEM scalar

    n_chunks = xt_ref.shape[1] // chunk   # static

    def body(c, carry):
        j = pl.multiple_of(c * chunk, chunk)
        x = xt_ref[:, pl.ds(j, chunk)]            # (N_INPUTS, chunk), batch on lanes

        # --- Layer 1 (K=4) and layer 2 (32x32): both on the MXU ------------
        h = jnp.dot(w1, x, preferred_element_type=jnp.float32) + b1
        h = _silu(h)
        h = jnp.dot(w2, h, preferred_element_type=jnp.float32) + b2
        h = _silu(h)                              # (WIDTH, chunk)

        # --- Output head (N=1): sublane-weighted reduction (XLU) -----------
        y = jnp.sum(wo * h, axis=0, keepdims=True) + bo      # (1, chunk)

        # --- Open-bounds normalization, folded:
        #   lower + sigmoid(y)*(upper - lower) = m*(0.1 + 0.9*sigmoid(y))
        m = x[M_COL:M_COL + 1, :]
        o_ref[:, pl.ds(j, chunk)] = m * (LOWER_FRAC +
                                         (1.0 - LOWER_FRAC) * _sigmoid(y))
        return carry

    if n_chunks == 1:
        body(0, 0)
    else:
        lax.fori_loop(0, n_chunks, body, 0, unroll=2)


def block_policy_forward(x, params, max_tile_b=16384, chunk=512):
    """x: (B, N_INPUTS) f32. Returns (B, N_OUTPUTS) f32."""
    w1, b1, w2, b2, wo, bo = params
    B = x.shape[0]

    # Lane-dense batch tiling: tile must be a multiple of 128.
    b_aligned = _round_up(B, 128)
    tile_b = min(max_tile_b, b_aligned)

    # Prefer an even grid of >= 2 steps whenever the batch spans more than one
    # 128-lane tile, so the "parallel" axis feeds both v7x TensorCores.
    if b_aligned >= 2 * 128:
        n_steps = max(2, -(-b_aligned // tile_b))
        if n_steps % 2:
            n_steps += 1
        tile_b = _round_up(-(-b_aligned // n_steps), 128)

    # In-kernel register-resident loop walks `chunk` lanes at a time.
    chunk = min(chunk, tile_b)
    tile_b = _round_up(tile_b, chunk)

    b_pad = _round_up(b_aligned, tile_b)
    grid = (b_pad // tile_b,)

    # Batch-on-lanes: feed x transposed, zero-pad the padded columns
    # (padded columns produce finite garbage; sliced off below).
    # TODO(synk): this transpose+pad is a separate XLA pass (~doubles HBM
    # traffic end-to-end); have the producer emit (N_INPUTS, B) if it matters.
    x_t = jnp.zeros((N_INPUTS, b_pad), jnp.float32).at[:, :B].set(x.T)

    const = lambda i: (0, 0)             # weights/biases resident in VMEM
    kernel = functools.partial(block_policy_kernel, chunk=chunk)
    out_t = pl.pallas_call(
        kernel,
        out_shape=jax.ShapeDtypeStruct((N_OUTPUTS, b_pad), jnp.float32),
        grid_spec=pltpu.PrefetchScalarGridSpec(
            num_scalar_prefetch=0,
            grid=grid,
            in_specs=[
                pl.BlockSpec((N_INPUTS, tile_b), lambda i: (0, i)),   # x_t tile
                pl.BlockSpec((WIDTH, N_INPUTS), const),               # W1
                pl.BlockSpec((WIDTH, 1), const),                      # b1
                pl.BlockSpec((WIDTH, WIDTH), const),                  # W2
                pl.BlockSpec((WIDTH, 1), const),                      # b2
                pl.BlockSpec((WIDTH, N_OUTPUTS), const),              # Wo (in,out)
                pl.BlockSpec(memory_space=pltpu.MemorySpace.SMEM),    # bo scalar
            ],
            out_specs=pl.BlockSpec((N_OUTPUTS, tile_b), lambda i: (0, i)),
        ),
        compiler_params=pltpu.CompilerParams(
            dimension_semantics=("parallel",),     # megacore on v7x
            vmem_limit_bytes=32 * 1024 * 1024,     # safe on all generations
        ),
    )(x_t, w1, b1, w2, b2, wo, bo)

    return out_t[0, :B].reshape(B, N_OUTPUTS)


def init_params(key):
    """torch.nn.init.normal_(weight, std=0.05), zero biases.

    Hidden-layer weights stored in torch Linear layout (out, in); the output
    head is stored transposed (in, out) = (WIDTH, 1) so the kernel does a
    sublane reduction without an in-kernel transpose.
    """
    k1, k2, k3 = jax.random.split(key, 3)
    w1 = 0.05 * jax.random.normal(k1, (WIDTH, N_INPUTS), jnp.float32)
    b1 = jnp.zeros((WIDTH, 1), jnp.float32)
    w2 = 0.05 * jax.random.normal(k2, (WIDTH, WIDTH), jnp.float32)
    b2 = jnp.zeros((WIDTH, 1), jnp.float32)
    wo = 0.05 * jax.random.normal(k3, (WIDTH, N_OUTPUTS), jnp.float32)
    bo = jnp.zeros((1, N_OUTPUTS), jnp.float32)
    return (w1, b1, w2, b2, wo, bo)


def reference_forward(x, params):
    """Pure-JAX reference mirroring the PyTorch forward."""
    w1, b1, w2, b2, wo, bo = params
    h = x @ w1.T + b1.T
    h = h * jax.nn.sigmoid(h)
    h = h @ w2.T + b2.T
    h = h * jax.nn.sigmoid(h)
    y = h @ wo + bo                      # (B, 1)
    m = x[:, M_COL:M_COL + 1]
    lower = LOWER_FRAC * m
    return lower + jax.nn.sigmoid(y) * (m - lower)


if __name__ == "__main__":
    key = jax.random.PRNGKey(0)
    k_x, k_p = jax.random.split(key)

    # B not a multiple of the tile -> exercises padding, a 2-step (even) grid,
    # and (with chunk=128) a 2-iteration in-kernel chunk loop per tile.
    B = 300
    x = jax.random.uniform(k_x, (B, N_INPUTS), jnp.float32,
                           minval=0.5, maxval=2.0)
    params = init_params(k_p)

    out = block_policy_forward(x, params, chunk=128)
    out = jax.block_until_ready(out)

    ref = reference_forward(x, params)
    assert out.shape == (B, N_OUTPUTS)
    # tanh-based sigmoid/silu is exact (no approximate reciprocal), so the
    # tolerance is tight f32-level now.
    assert jnp.allclose(out, ref, atol=1e-4, rtol=1e-4), (
        float(jnp.max(jnp.abs(out - ref))))

    print("KERNEL_OK")
</pallas_src>

<mosaic_0001>
module attributes {stable_mosaic.version = 11 : i64} {
  func.func @block_policy_kernel(%arg0: i32, %arg1: memref<4x256xf32, #tpu.memory_space<vmem>>, %arg2: memref<32x4xf32, #tpu.memory_space<vmem>>, %arg3: memref<32x1xf32, #tpu.memory_space<vmem>>, %arg4: memref<32x32xf32, #tpu.memory_space<vmem>>, %arg5: memref<32x1xf32, #tpu.memory_space<vmem>>, %arg6: memref<32x1xf32, #tpu.memory_space<vmem>>, %arg7: memref<1x1xf32, #tpu.memory_space<smem>>, %arg8: memref<1x256xf32, #tpu.memory_space<vmem>>) attributes {dimension_semantics = [#tpu.dimension_semantics<parallel>], iteration_bounds = array<i64: 2>, scalar_prefetch = 0 : i64, scratch_operands = 0 : i64, tpu.core_type = #tpu.core_type<tc>, window_params = [{transform_indices = @transform_0, window_bounds = array<i64: 4, 256>}, {pipeline_mode = #tpu.pipeline_mode<synchronous>, transform_indices = @transform_1, window_bounds = array<i64: 32, 4>}, {pipeline_mode = #tpu.pipeline_mode<synchronous>, transform_indices = @transform_2, window_bounds = array<i64: 32, 1>}, {pipeline_mode = #tpu.pipeline_mode<synchronous>, transform_indices = @transform_3, window_bounds = array<i64: 32, 32>}, {pipeline_mode = #tpu.pipeline_mode<synchronous>, transform_indices = @transform_4, window_bounds = array<i64: 32, 1>}, {pipeline_mode = #tpu.pipeline_mode<synchronous>, transform_indices = @transform_5, window_bounds = array<i64: 32, 1>}, {transform_indices = @transform_6, window_bounds = array<i64: 1, 1>}, {transform_indices = @transform_7, window_bounds = array<i64: 1, 256>}]} {
    %c0 = arith.constant 0 : index
    %c0_0 = arith.constant 0 : index
    %0 = vector.load %arg2[%c0, %c0_0] : memref<32x4xf32, #tpu.memory_space<vmem>>, vector<32x4xf32>
    %c0_1 = arith.constant 0 : index
    %c0_2 = arith.constant 0 : index
    %1 = vector.load %arg3[%c0_1, %c0_2] : memref<32x1xf32, #tpu.memory_space<vmem>>, vector<32x1xf32>
    %c0_3 = arith.constant 0 : index
    %c0_4 = arith.constant 0 : index
    %2 = vector.load %arg4[%c0_3, %c0_4] : memref<32x32xf32, #tpu.memory_space<vmem>>, vector<32x32xf32>
    %c0_5 = arith.constant 0 : index
    %c0_6 = arith.constant 0 : index
    %3 = vector.load %arg5[%c0_5, %c0_6] : memref<32x1xf32, #tpu.memory_space<vmem>>, vector<32x1xf32>
    %c0_7 = arith.constant 0 : index
    %c0_8 = arith.constant 0 : index
    %4 = vector.load %arg6[%c0_7, %c0_8] : memref<32x1xf32, #tpu.memory_space<vmem>>, vector<32x1xf32>
    %c0_9 = arith.constant 0 : index
    %c0_10 = arith.constant 0 : index
    %5 = memref.load %arg7[%c0_9, %c0_10] : memref<1x1xf32, #tpu.memory_space<smem>>
    %c0_i32 = arith.constant 0 : i32
    %c128_i32 = arith.constant 128 : i32
    %6 = arith.muli %c0_i32, %c128_i32 : i32
    %7 = tpu.assume_multiple %6, 128 : i32
    %c0_11 = arith.constant 0 : index
    %8 = arith.index_cast %7 : i32 to index
    %9 = vector.load %arg1[%c0_11, %8] : memref<4x256xf32, #tpu.memory_space<vmem>>, vector<4x128xf32>
    %cst = arith.constant dense<0.000000e+00> : vector<32x128xf32>
    %10 = tpu.matmul %0, %9, %cst {dimension_numbers = #tpu.dot_dimension_numbers<[1], [0], [0], [1], [0, 0, 1, 1], [], []>} : vector<32x4xf32>, vector<4x128xf32>, vector<32x128xf32> -> vector<32x128xf32>
    %11 = vector.broadcast %1 : vector<32x1xf32> to vector<32x128xf32>
    %12 = arith.addf %10, %11 : vector<32x128xf32>
    %cst_12 = arith.constant 5.000000e-01 : f32
    %13 = vector.broadcast %cst_12 : f32 to vector<32x128xf32>
    %14 = arith.mulf %13, %12 : vector<32x128xf32>
    %15 = math.tanh %14 : vector<32x128xf32>
    %cst_13 = arith.constant 1.000000e+00 : f32
    %16 = vector.broadcast %cst_13 : f32 to vector<32x128xf32>
    %17 = arith.addf %16, %15 : vector<32x128xf32>
    %cst_14 = arith.constant 5.000000e-01 : f32
    %18 = vector.broadcast %cst_14 : f32 to vector<32x128xf32>
    %19 = arith.mulf %18, %17 : vector<32x128xf32>
    %20 = arith.mulf %12, %19 : vector<32x128xf32>
    %cst_15 = arith.constant dense<0.000000e+00> : vector<32x128xf32>
    %21 = tpu.matmul %2, %20, %cst_15 {dimension_numbers = #tpu.dot_dimension_numbers<[1], [0], [0], [1], [0, 0, 1, 1], [], []>} : vector<32x32xf32>, vector<32x128xf32>, vector<32x128xf32> -> vector<32x128xf32>
    %22 = vector.broadcast %3 : vector<32x1xf32> to vector<32x128xf32>
    %23 = arith.addf %21, %22 : vector<32x128xf32>
    %cst_16 = arith.constant 5.000000e-01 : f32
    %24 = vector.broadcast %cst_16 : f32 to vector<32x128xf32>
    %25 = arith.mulf %24, %23 : vector<32x128xf32>
    %26 = math.tanh %25 : vector<32x128xf32>
    %cst_17 = arith.constant 1.000000e+00 : f32
    %27 = vector.broadcast %cst_17 : f32 to vector<32x128xf32>
    %28 = arith.addf %27, %26 : vector<32x128xf32>
    %cst_18 = arith.constant 5.000000e-01 : f32
    %29 = vector.broadcast %cst_18 : f32 to vector<32x128xf32>
    %30 = arith.mulf %29, %28 : vector<32x128xf32>
    %31 = arith.mulf %23, %30 : vector<32x128xf32>
    %32 = vector.broadcast %4 : vector<32x1xf32> to vector<32x128xf32>
    %33 = arith.mulf %32, %31 : vector<32x128xf32>
    %cst_19 = arith.constant dense<0.000000e+00> : vector<128xf32>
    %34 = vector.multi_reduction <add>, %33, %cst_19 [0] : vector<32x128xf32> to vector<128xf32>
    %35 = vector.shape_cast %34 : vector<128xf32> to vector<1x128xf32>
    %36 = vector.broadcast %5 : f32 to vector<1x128xf32>
    %37 = arith.addf %35, %36 : vector<1x128xf32>
    %38 = vector.extract_strided_slice %9 {offsets = [0, 0], sizes = [1, 128], strides = [1, 1]} : vector<4x128xf32> to vector<1x128xf32>
    %cst_20 = arith.constant 5.000000e-01 : f32
    %39 = vector.broadcast %cst_20 : f32 to vector<1x128xf32>
    %40 = arith.mulf %39, %37 : vector<1x128xf32>
    %41 = math.tanh %40 : vector<1x128xf32>
    %cst_21 = arith.constant 1.000000e+00 : f32
    %42 = vector.broadcast %cst_21 : f32 to vector<1x128xf32>
    %43 = arith.addf %42, %41 : vector<1x128xf32>
    %cst_22 = arith.constant 5.000000e-01 : f32
    %44 = vector.broadcast %cst_22 : f32 to vector<1x128xf32>
    %45 = arith.mulf %44, %43 : vector<1x128xf32>
    %cst_23 = arith.constant 0.899999976 : f32
    %46 = vector.broadcast %cst_23 : f32 to vector<1x128xf32>
    %47 = arith.mulf %46, %45 : vector<1x128xf32>
    %cst_24 = arith.constant 1.000000e-01 : f32
    %48 = vector.broadcast %cst_24 : f32 to vector<1x128xf32>
    %49 = arith.addf %48, %47 : vector<1x128xf32>
    %50 = arith.mulf %38, %49 : vector<1x128xf32>
    %c0_25 = arith.constant 0 : index
    %51 = arith.index_cast %7 : i32 to index
    %52 = vector.load %arg8[%c0_25, %51] : memref<1x256xf32, #tpu.memory_space<vmem>>, vector<1x128xf32>
    tpu.vector_store %arg8[%c0_25, %51], %50 {strides = array<i32>} : memref<1x256xf32, #tpu.memory_space<vmem>>, vector<1x128xf32>,
    %c1_i32 = arith.constant 1 : i32
    %c128_i32_26 = arith.constant 128 : i32
    %53 = arith.muli %c1_i32, %c128_i32_26 : i32
    %54 = tpu.assume_multiple %53, 128 : i32
    %c0_27 = arith.constant 0 : index
    %55 = arith.index_cast %54 : i32 to index
    %56 = vector.load %arg1[%c0_27, %55] : memref<4x256xf32, #tpu.memory_space<vmem>>, vector<4x128xf32>
    %cst_28 = arith.constant dense<0.000000e+00> : vector<32x128xf32>
    %57 = tpu.matmul %0, %56, %cst_28 {dimension_numbers = #tpu.dot_dimension_numbers<[1], [0], [0], [1], [0, 0, 1, 1], [], []>} : vector<32x4xf32>, vector<4x128xf32>, vector<32x128xf32> -> vector<32x128xf32>
    %58 = vector.broadcast %1 : vector<32x1xf32> to vector<32x128xf32>
    %59 = arith.addf %57, %58 : vector<32x128xf32>
    %cst_29 = arith.constant 5.000000e-01 : f32
    %60 = vector.broadcast %cst_29 : f32 to vector<32x128xf32>
    %61 = arith.mulf %60, %59 : vector<32x128xf32>
    %62 = math.tanh %61 : vector<32x128xf32>
    %cst_30 = arith.constant 1.000000e+00 : f32
    %63 = vector.broadcast %cst_30 : f32 to vector<32x128xf32>
    %64 = arith.addf %63, %62 : vector<32x128xf32>
    %cst_31 = arith.constant 5.000000e-01 : f32
    %65 = vector.broadcast %cst_31 : f32 to vector<32x128xf32>
    %66 = arith.mulf %65, %64 : vector<32x128xf32>
    %67 = arith.mulf %59, %66 : vector<32x128xf32>
    %cst_32 = arith.constant dense<0.000000e+00> : vector<32x128xf32>
    %68 = tpu.matmul %2, %67, %cst_32 {dimension_numbers = #tpu.dot_dimension_numbers<[1], [0], [0], [1], [0, 0, 1, 1], [], []>} : vector<32x32xf32>, vector<32x128xf32>, vector<32x128xf32> -> vector<32x128xf32>
    %69 = vector.broadcast %3 : vector<32x1xf32> to vector<32x128xf32>
    %70 = arith.addf %68, %69 : vector<32x128xf32>
    %cst_33 = arith.constant 5.000000e-01 : f32
    %71 = vector.broadcast %cst_33 : f32 to vector<32x128xf32>
    %72 = arith.mulf %71, %70 : vector<32x128xf32>
    %73 = math.tanh %72 : vector<32x128xf32>
    %cst_34 = arith.constant 1.000000e+00 : f32
    %74 = vector.broadcast %cst_34 : f32 to vector<32x128xf32>
    %75 = arith.addf %74, %73 : vector<32x128xf32>
    %cst_35 = arith.constant 5.000000e-01 : f32
    %76 = vector.broadcast %cst_35 : f32 to vector<32x128xf32>
    %77 = arith.mulf %76, %75 : vector<32x128xf32>
    %78 = arith.mulf %70, %77 : vector<32x128xf32>
    %79 = vector.broadcast %4 : vector<32x1xf32> to vector<32x128xf32>
    %80 = arith.mulf %79, %78 : vector<32x128xf32>
    %cst_36 = arith.constant dense<0.000000e+00> : vector<128xf32>
    %81 = vector.multi_reduction <add>, %80, %cst_36 [0] : vector<32x128xf32> to vector<128xf32>
    %82 = vector.shape_cast %81 : vector<128xf32> to vector<1x128xf32>
    %83 = vector.broadcast %5 : f32 to vector<1x128xf32>
    %84 = arith.addf %82, %83 : vector<1x128xf32>
    %85 = vector.extract_strided_slice %56 {offsets = [0, 0], sizes = [1, 128], strides = [1, 1]} : vector<4x128xf32> to vector<1x128xf32>
    %cst_37 = arith.constant 5.000000e-01 : f32
    %86 = vector.broadcast %cst_37 : f32 to vector<1x128xf32>
    %87 = arith.mulf %86, %84 : vector<1x128xf32>
    %88 = math.tanh %87 : vector<1x128xf32>
    %cst_38 = arith.constant 1.000000e+00 : f32
    %89 = vector.broadcast %cst_38 : f32 to vector<1x128xf32>
    %90 = arith.addf %89, %88 : vector<1x128xf32>
    %cst_39 = arith.constant 5.000000e-01 : f32
    %91 = vector.broadcast %cst_39 : f32 to vector<1x128xf32>
    %92 = arith.mulf %91, %90 : vector<1x128xf32>
    %cst_40 = arith.constant 0.899999976 : f32
    %93 = vector.broadcast %cst_40 : f32 to vector<1x128xf32>
    %94 = arith.mulf %93, %92 : vector<1x128xf32>
    %cst_41 = arith.constant 1.000000e-01 : f32
    %95 = vector.broadcast %cst_41 : f32 to vector<1x128xf32>
    %96 = arith.addf %95, %94 : vector<1x128xf32>
    %97 = arith.mulf %85, %96 : vector<1x128xf32>
    %c0_42 = arith.constant 0 : index
    %98 = arith.index_cast %54 : i32 to index
    %99 = vector.load %arg8[%c0_42, %98] : memref<1x256xf32, #tpu.memory_space<vmem>>, vector<1x128xf32>
    tpu.vector_store %arg8[%c0_42, %98], %97 {strides = array<i32>} : memref<1x256xf32, #tpu.memory_space<vmem>>, vector<1x128xf32>,
    %c2_i32 = arith.constant 2 : i32
    return
  }
  func.func @transform_0(%arg0: i32) -> (i32, i32) {
    %c0_i32 = arith.constant 0 : i32
    %c0_i32_0 = arith.constant 0 : i32
    return %c0_i32, %arg0 : i32, i32
  }
  func.func @transform_1(%arg0: i32) -> (i32, i32) {
    %c0_i32 = arith.constant 0 : i32
    %c0_i32_0 = arith.constant 0 : i32
    %c0_i32_1 = arith.constant 0 : i32
    return %c0_i32, %c0_i32_0 : i32, i32
  }
  func.func @transform_2(%arg0: i32) -> (i32, i32) {
    %c0_i32 = arith.constant 0 : i32
    %c0_i32_0 = arith.constant 0 : i32
    %c0_i32_1 = arith.constant 0 : i32
    return %c0_i32, %c0_i32_0 : i32, i32
  }
  func.func @transform_3(%arg0: i32) -> (i32, i32) {
    %c0_i32 = arith.constant 0 : i32
    %c0_i32_0 = arith.constant 0 : i32
    %c0_i32_1 = arith.constant 0 : i32
    return %c0_i32, %c0_i32_0 : i32, i32
  }
  func.func @transform_4(%arg0: i32) -> (i32, i32) {
    %c0_i32 = arith.constant 0 : i32
    %c0_i32_0 = arith.constant 0 : i32
    %c0_i32_1 = arith.constant 0 : i32
    return %c0_i32, %c0_i32_0 : i32, i32
  }
  func.func @transform_5(%arg0: i32) -> (i32, i32) {
    %c0_i32 = arith.constant 0 : i32
    %c0_i32_0 = arith.constant 0 : i32
    %c0_i32_1 = arith.constant 0 : i32
    return %c0_i32, %c0_i32_0 : i32, i32
  }
  func.func @transform_6(%arg0: i32) -> (i32, i32) {
    %c0_i32 = arith.constant 0 : i32
    %c0_i32_0 = arith.constant 0 : i32
    %c0_i32_1 = arith.constant 0 : i32
    return %c0_i32, %c0_i32_0 : i32, i32
  }
  func.func @transform_7(%arg0: i32) -> (i32, i32) {
    %c0_i32 = arith.constant 0 : i32
    %c0_i32_0 = arith.constant 0 : i32
    return %c0_i32, %arg0 : i32, i32
  }
}

</mosaic_0001>

<llo_original>
// kernel: tpu_custom_call.1
$region0: #{tpu_custom_call.1}
  #allocation0 [shape = 'u32[]', space=smem, size = 0x4, offset = 0x4, fixed_abs, tag = 'smem constant byte address 0x4 - core index']
  #allocation1 [shape = 'u32[144,128]{1,0:T(1,128)}', space=vmem, size = 0x12000, scoped, tag = 'internal scratch']
  #allocation2 [shape = 'f32[1,1]{1,0:T(1,128)S(6)}', space=smem, size = 0x200, scoped, tag = 'scoped memory for tpu_custom_call.1']
  %s0 = inlined_call_operand.vmem [shape: f32[4,512], index: 0, kind: input, shape index: {}]
  %s1 = inlined_call_operand.vmem [shape: f32[32,4], index: 1, kind: input, shape index: {}]
  %s2 = inlined_call_operand.vmem [shape: f32[32,1], index: 2, kind: input, shape index: {}]
  %s3 = inlined_call_operand.vmem [shape: f32[32,32], index: 3, kind: input, shape index: {}]
  %s4 = inlined_call_operand.vmem [shape: f32[32,1], index: 4, kind: input, shape index: {}]
  %s5 = inlined_call_operand.vmem [shape: f32[32,1], index: 5, kind: input, shape index: {}]
  %s6 = inlined_call_operand.<no memory space> [shape: f32[1,1], index: 6, kind: input, shape index: {}]
  %s7 = inlined_call_operand.hbm [shape: f32[1,512], index: 7, kind: output, shape index: {}]
  %s8 = sld [smem:[#allocation0]]
  $region61: #{tpu_custom_call.1} parent=0
    _
  %s10 = ssub.s32 1, %s8
  %s11 = scalar_select 0, %s10, %s8
  %12 = sst [smem:[#allocation2]] %s6
  $region1: #{tpu_custom_call.1} parent=0
    #allocation3 [shape = 'u8[2048]{0}', space=vmem, size = 0x800, scoped, tag = 'output window, operand 0']
    #allocation4 [shape = 's32[2]{0}', space=sflag, size = 0x8, scoped, tag = 'scoped memory for tpu_custom_call.1']
    %13 = vsyncpa [#allocation4], 0
    %s14 = scalar_lea.sflag [#allocation4], 1
    %15 = vsyncpa %s14, 0
    loop: start=0, step=1, limit=4
    $region2: #{tpu_custom_call.1} parent=1 // loop_pre_header
      _
    $region3: #{tpu_custom_call.1} parent=1 // loop_header
      %s17 = sphi 0, %s21
      %p18 = scmp.ge.s32.totalorder %s17, 4
      %s27 = sphi 0, %s29
      %s30 = sphi 0, %s27
      %s31 = sphi 0, %s30
      %s47 = sphi 0, %s31
      %s51 = sphi 0, %s51
      %s53 = sphi 0, %s51
      %s54 = sphi 0, %s53
      %s68 = sphi 0, %s54
      %s72 = sphi 0, %s72
      %s74 = sphi 0, %s72
      %s75 = sphi 0, %s74
      %s89 = sphi 0, %s75
      %s93 = sphi 0, %s93
      %s95 = sphi 0, %s93
      %s96 = sphi 0, %s95
      %s110 = sphi 0, %s96
      %s114 = sphi 0, %s114
      %s116 = sphi 0, %s114
      %s117 = sphi 0, %s116
      %s131 = sphi 0, %s117
      %s135 = sphi 0, %s135
      %s137 = sphi 0, %s135
      %s138 = sphi 0, %s137
      %s152 = sphi 0, %s138
      %s156 = sphi 0, %s156
      %s158 = sphi 0, %s156
      %s159 = sphi 0, %s158
      %s173 = sphi 0, %s159
      %s179 = sphi 0, %s181
      %s182 = sphi 0, %s179
      %s183 = sphi 0, %s182
      %s199 = sphi 0, %s183
    $region4: #{tpu_custom_call.1} parent=1 // loop_header_branch
      %20 = sbr.rel (%p18) target = $region8
    $region5: #{tpu_custom_call.1} parent=1 // loop_body
      %s22 = ssub.s32 %s17, 1
      %s23 = ssub.s32 %s17, 2
      %s24 = sadd.s32 %s17, 1
      %s25 = ssub.s32 %s17, %s24
      %p26 = scmp.eq.s32.totalorder %s25, 0
      %s28 = sadd.s32 %s27, 1
      %s29 = scalar_select %p26, %s27, %s28
      %p32 = pneg %p26
      %p33 = scmp.eq.s32.totalorder %s17, 1
      %p34 = por %p32, %p33
      %p35 = scmp.ne.s32.totalorder %s27, %s30
      %p36 = scmp.eq.s32.totalorder %s17, 0
      %p37 = por %p35, %p36
      %p38 = scmp.ne.s32.totalorder %s27, %s30
      %p39 = scmp.eq.s32.totalorder %s22, 1
      %p40 = por %p38, %p39
      %p41 = scmp.ne.s32.totalorder %s30, %s31
      %p42 = scmp.eq.s32.totalorder %s22, 0
      %p43 = por %p41, %p42
      %p44 = scmp.ne.s32.totalorder %s30, %s31
      %p45 = scmp.eq.s32.totalorder %s23, 1
      %p46 = por %p44, %p45
      %p48 = scmp.ne.s32.totalorder %s31, %s47
      %p49 = scmp.eq.s32.totalorder %s23, 0
      %p50 = por %p48, %p49
      %s52 = sadd.s32 %s51, 1
      %p55 = scmp.eq.s32.totalorder %s17, 1
      %p56 = scmp.ne.s32.totalorder %s51, %s53
      %p57 = scmp.eq.s32.totalorder %s17, 0
      %p58 = por %p56, %p57
      %p59 = scmp.ne.s32.totalorder %s51, %s53
      %p60 = scmp.eq.s32.totalorder %s22, 1
      %p61 = por %p59, %p60
      %p62 = scmp.ne.s32.totalorder %s53, %s54
      %p63 = scmp.eq.s32.totalorder %s22, 0
      %p64 = por %p62, %p63
      %p65 = scmp.ne.s32.totalorder %s53, %s54
      %p66 = scmp.eq.s32.totalorder %s23, 1
      %p67 = por %p65, %p66
      %p69 = scmp.ne.s32.totalorder %s54, %s68
      %p70 = scmp.eq.s32.totalorder %s23, 0
      %p71 = por %p69, %p70
      %s73 = sadd.s32 %s72, 1
      %p76 = scmp.eq.s32.totalorder %s17, 1
      %p77 = scmp.ne.s32.totalorder %s72, %s74
      %p78 = scmp.eq.s32.totalorder %s17, 0
      %p79 = por %p77, %p78
      %p80 = scmp.ne.s32.totalorder %s72, %s74
      %p81 = scmp.eq.s32.totalorder %s22, 1
      %p82 = por %p80, %p81
      %p83 = scmp.ne.s32.totalorder %s74, %s75
      %p84 = scmp.eq.s32.totalorder %s22, 0
      %p85 = por %p83, %p84
      %p86 = scmp.ne.s32.totalorder %s74, %s75
      %p87 = scmp.eq.s32.totalorder %s23, 1
      %p88 = por %p86, %p87
      %p90 = scmp.ne.s32.totalorder %s75, %s89
      %p91 = scmp.eq.s32.totalorder %s23, 0
      %p92 = por %p90, %p91
      %s94 = sadd.s32 %s93, 1
      %p97 = scmp.eq.s32.totalorder %s17, 1
      %p98 = scmp.ne.s32.totalorder %s93, %s95
      %p99 = scmp.eq.s32.totalorder %s17, 0
      %p100 = por %p98, %p99
      %p101 = scmp.ne.s32.totalorder %s93, %s95
      %p102 = scmp.eq.s32.totalorder %s22, 1
      %p103 = por %p101, %p102
      %p104 = scmp.ne.s32.totalorder %s95, %s96
      %p105 = scmp.eq.s32.totalorder %s22, 0
      %p106 = por %p104, %p105
      %p107 = scmp.ne.s32.totalorder %s95, %s96
      %p108 = scmp.eq.s32.totalorder %s23, 1
      %p109 = por %p107, %p108
      %p111 = scmp.ne.s32.totalorder %s96, %s110
      %p112 = scmp.eq.s32.totalorder %s23, 0
      %p113 = por %p111, %p112
      %s115 = sadd.s32 %s114, 1
      %p118 = scmp.eq.s32.totalorder %s17, 1
      %p119 = scmp.ne.s32.totalorder %s114, %s116
      %p120 = scmp.eq.s32.totalorder %s17, 0
      %p121 = por %p119, %p120
      %p122 = scmp.ne.s32.totalorder %s114, %s116
      %p123 = scmp.eq.s32.totalorder %s22, 1
      %p124 = por %p122, %p123
      %p125 = scmp.ne.s32.totalorder %s116, %s117
      %p126 = scmp.eq.s32.totalorder %s22, 0
      %p127 = por %p125, %p126
      %p128 = scmp.ne.s32.totalorder %s116, %s117
      %p129 = scmp.eq.s32.totalorder %s23, 1
      %p130 = por %p128, %p129
      %p132 = scmp.ne.s32.totalorder %s117, %s131
      %p133 = scmp.eq.s32.totalorder %s23, 0
      %p134 = por %p132, %p133
      %s136 = sadd.s32 %s135, 1
      %p139 = scmp.eq.s32.totalorder %s17, 1
      %p140 = scmp.ne.s32.totalorder %s135, %s137
      %p141 = scmp.eq.s32.totalorder %s17, 0
      %p142 = por %p140, %p141
      %p143 = scmp.ne.s32.totalorder %s135, %s137
      %p144 = scmp.eq.s32.totalorder %s22, 1
      %p145 = por %p143, %p144
      %p146 = scmp.ne.s32.totalorder %s137, %s138
      %p147 = scmp.eq.s32.totalorder %s22, 0
      %p148 = por %p146, %p147
      %p149 = scmp.ne.s32.totalorder %s137, %s138
      %p150 = scmp.eq.s32.totalorder %s23, 1
      %p151 = por %p149, %p150
      %p153 = scmp.ne.s32.totalorder %s138, %s152
      %p154 = scmp.eq.s32.totalorder %s23, 0
      %p155 = por %p153, %p154
      %s157 = sadd.s32 %s156, 1
      %p160 = scmp.eq.s32.totalorder %s17, 1
      %p161 = scmp.ne.s32.totalorder %s156, %s158
      %p162 = scmp.eq.s32.totalorder %s17, 0
      %p163 = por %p161, %p162
      %p164 = scmp.ne.s32.totalorder %s156, %s158
      %p165 = scmp.eq.s32.totalorder %s22, 1
      %p166 = por %p164, %p165
      %p167 = scmp.ne.s32.totalorder %s158, %s159
      %p168 = scmp.eq.s32.totalorder %s22, 0
      %p169 = por %p167, %p168
      %p170 = scmp.ne.s32.totalorder %s158, %s159
      %p171 = scmp.eq.s32.totalorder %s23, 1
      %p172 = por %p170, %p171
      %p174 = scmp.ne.s32.totalorder %s159, %s173
      %p175 = scmp.eq.s32.totalorder %s23, 0
      %p176 = por %p174, %p175
      %s177 = ssub.s32 %s17, %s24
      %p178 = scmp.eq.s32.totalorder %s177, 0
      %s180 = sadd.s32 %s179, 1
      %s181 = scalar_select %p178, %s179, %s180
      %p184 = pneg %p178
      %p185 = scmp.eq.s32.totalorder %s17, 1
      %p186 = por %p184, %p185
      %p187 = scmp.ne.s32.totalorder %s179, %s182
      %p188 = scmp.eq.s32.totalorder %s17, 0
      %p189 = por %p187, %p188
      %p190 = scmp.ne.s32.totalorder %s179, %s182
      %p191 = scmp.eq.s32.totalorder %s22, 1
      %p192 = por %p190, %p191
      %p193 = scmp.ne.s32.totalorder %s182, %s183
      %p194 = scmp.eq.s32.totalorder %s22, 0
      %p195 = por %p193, %p194
      %p196 = scmp.ne.s32.totalorder %s182, %s183
      %p197 = scmp.eq.s32.totalorder %s23, 1
      %p198 = por %p196, %p197
      %p200 = scmp.ne.s32.totalorder %s183, %s199
      %p201 = scmp.eq.s32.totalorder %s23, 0
      %p202 = por %p200, %p201
      %p203 = scmp.le.s32.totalorder 1, %s17
      %p204 = scmp.lt.s32.totalorder %s17, 3
      %p205 = pnand %p203, %p204
      %p206 = pneg %p205
      // Predicated region
      $region9: #{tpu_custom_call.1} parent=5 // pred_check
        _
      $region10: #{tpu_custom_call.1} parent=5 // pred_check_branch
        %208 = sbr.rel (%p205) target = $region12
      $region11: #{tpu_custom_call.1} parent=5 // pred_region
        %s209 = ssub.s32 %s17, 1
        // Predicated region
        $region13: #{tpu_custom_call.1} parent=11 // pred_check
          %p210 = pneg %p64
        $region14: #{tpu_custom_call.1} parent=11 // pred_check_branch
          %212 = sbr.rel (%p210) target = $region16
        $region15: #{tpu_custom_call.1} parent=11 // pred_region
          _
        $region16: #{tpu_custom_call.1} parent=11 // pred_fallthru
          _
        // Predicated region
        $region17: #{tpu_custom_call.1} parent=11 // pred_check
          %p213 = pneg %p85
        $region18: #{tpu_custom_call.1} parent=11 // pred_check_branch
          %215 = sbr.rel (%p213) target = $region20
        $region19: #{tpu_custom_call.1} parent=11 // pred_region
          _
        $region20: #{tpu_custom_call.1} parent=11 // pred_fallthru
          _
        // Predicated region
        $region21: #{tpu_custom_call.1} parent=11 // pred_check
          %p216 = pneg %p106
        $region22: #{tpu_custom_call.1} parent=11 // pred_check_branch
          %218 = sbr.rel (%p216) target = $region24
        $region23: #{tpu_custom_call.1} parent=11 // pred_region
          _
        $region24: #{tpu_custom_call.1} parent=11 // pred_fallthru
          _
        // Predicated region
        $region25: #{tpu_custom_call.1} parent=11 // pred_check
          %p219 = pneg %p127
        $region26: #{tpu_custom_call.1} parent=11 // pred_check_branch
          %221 = sbr.rel (%p219) target = $region28
        $region27: #{tpu_custom_call.1} parent=11 // pred_region
          _
        $region28: #{tpu_custom_call.1} parent=11 // pred_fallthru
          _
        // Predicated region
        $region29: #{tpu_custom_call.1} parent=11 // pred_check
          %p222 = pneg %p148
        $region30: #{tpu_custom_call.1} parent=11 // pred_check_branch
          %224 = sbr.rel (%p222) target = $region32
        $region31: #{tpu_custom_call.1} parent=11 // pred_region
          _
        $region32: #{tpu_custom_call.1} parent=11 // pred_fallthru
          _
        // Predicated region
        $region33: #{tpu_custom_call.1} parent=11 // pred_check
          %p225 = pneg %p169
        $region34: #{tpu_custom_call.1} parent=11 // pred_check_branch
          %227 = sbr.rel (%p225) target = $region36
        $region35: #{tpu_custom_call.1} parent=11 // pred_region
          _
        $region36: #{tpu_custom_call.1} parent=11 // pred_fallthru
          _
      $region12: #{tpu_custom_call.1} parent=5 // pred_fallthru
        _
      %p228 = scmp.lt.s32.totalorder %s17, 2
      // Predicated region
      $region37: #{tpu_custom_call.1} parent=5 // pred_check
        %p229 = pneg %p228
      $region38: #{tpu_custom_call.1} parent=5 // pred_check_branch
        %231 = sbr.rel (%p229) target = $region40
      $region39: #{tpu_custom_call.1} parent=5 // pred_region
        // Predicated region
        $region41: #{tpu_custom_call.1} parent=39 // pred_check
          %p232 = pneg %p37
        $region42: #{tpu_custom_call.1} parent=39 // pred_check_branch
          %234 = sbr.rel (%p232) target = $region44
        $region43: #{tpu_custom_call.1} parent=39 // pred_region
          %s235 = smul.u32 2, %s17
          %p236 = scmp.lt.s32.totalorder %s235, 3
          %s237 = scalar_select %p236, %s235, 3
          %s238 = smul.addr %s237, 4
          %s239 = scalar_lea.vmem %s0, %s238
          %s240 = smul.u32 2, %s17
        $region44: #{tpu_custom_call.1} parent=39 // pred_fallthru
          _
      $region40: #{tpu_custom_call.1} parent=5 // pred_fallthru
        _
      %p241 = scmp.le.s32.totalorder 1, %s17
      %p242 = scmp.lt.s32.totalorder %s17, 3
      %p243 = pnand %p241, %p242
      %p244 = pneg %p243
      // Predicated region
      $region45: #{tpu_custom_call.1} parent=5 // pred_check
        _
      $region46: #{tpu_custom_call.1} parent=5 // pred_check_branch
        %246 = sbr.rel (%p243) target = $region48
      $region47: #{tpu_custom_call.1} parent=5 // pred_region
        %s247 = ssub.s32 %s17, 1
        %s248 = smul.u32 2, %s22
        %p249 = scmp.lt.s32.totalorder %s248, 3
        %s250 = scalar_select %p249, %s248, 3
        %s251 = smul.addr %s250, 4
        %s252 = scalar_lea.vmem %s0, %s251
        %p253 = pneg %p43
        %p254 = pneg %p40
        %p255 = pneg %p64
        %p256 = pneg %p61
        %p257 = pneg %p85
        %p258 = pneg %p82
        %p259 = pneg %p106
        %p260 = pneg %p103
        %p261 = pneg %p127
        %p262 = pneg %p124
        %p263 = pneg %p148
        %p264 = pneg %p145
        %p265 = pneg %p169
        %p266 = pneg %p166
        %p267 = pneg %p195
        %p268 = pneg %p192
        %s269 = sand.u32 %s182, 1
        %s270 = scalar_lea.sflag [#allocation4], %s269
        %s271 = sand.u32 %s182, 1
        %s272 = smul.addr %s271, 2
        %s273 = scalar_lea.vmem [#allocation3], %s272
        %s274 = smul.u32 2, %s22
        %p275 = scmp.lt.s32.totalorder %s274, 3
        %s276 = scalar_select %p275, %s274, 3
        %s277 = smul.addr %s276, 4
        %s278 = scalar_lea.vmem %s0, %s277
        %s279 = smul.u32 2, %s22
        %s280 = smul.u32 2, %s22
        %v281 = vld [vmem:[%s1] sm:$0xff]
        %v282 = vld [vmem:[%s1 + $0x8] sm:$0xff]
        %v283 = vld [vmem:[%s1 + $0x10] sm:$0xff]
        %v284 = vld [vmem:[%s1 + $0x18] sm:$0xff]
        %v285 = vld [vmem:[%s2] sm:$0xff]
        %v286 = vld [vmem:[%s2 + $0x8] sm:$0xff]
        %v287 = vld [vmem:[%s2 + $0x10] sm:$0xff]
        %v288 = vld [vmem:[%s2 + $0x18] sm:$0xff]
        %v289 = vld [vmem:[%s3] sm:$0xff]
        %v290 = vld [vmem:[%s3 + $0x8] sm:$0xff]
        %v291 = vld [vmem:[%s3 + $0x10] sm:$0xff]
        %v292 = vld [vmem:[%s3 + $0x18] sm:$0xff]
        %v293 = vld [vmem:[%s4] sm:$0xff]
        %v294 = vld [vmem:[%s4 + $0x8] sm:$0xff]
        %v295 = vld [vmem:[%s4 + $0x10] sm:$0xff]
        %v296 = vld [vmem:[%s4 + $0x18] sm:$0xff]
        %v297 = vld [vmem:[%s5] sm:$0xff]
        %v298 = vld [vmem:[%s5 + $0x8] sm:$0xff]
        %v299 = vld [vmem:[%s5 + $0x10] sm:$0xff]
        %v300 = vld [vmem:[%s5 + $0x18] sm:$0xff]
        %s301 = sld [smem:[#allocation2]]
        %v302 = vld [vmem:[%s278] sm:$0xf]
        %304 = vset.pattern.permute.xlu0 0
        %305 = vperm.xlu0 %304, %v285
        %v306 = vpop.permute.xlu0 %305
        %309 = vset.pattern.permute.xlu0 0
        %310 = vperm.xlu0 %309, %v286
        %v311 = vpop.permute.xlu0 %310
        %314 = vset.pattern.permute.xlu0 0
        %315 = vperm.xlu0 %314, %v287
        %v316 = vpop.permute.xlu0 %315
        %319 = vset.pattern.permute.xlu0 0
        %320 = vperm.xlu0 %319, %v288
        %v321 = vpop.permute.xlu0 %320
        %vm323 = vcmask 31744
        %v325 = vsel %vm323, %v281, 0
        %v328 = vsel %vm323, %v282, 0
        %v331 = vsel %vm323, %v283, 0
        %v334 = vsel %vm323, %v284, 0
        %vm336 = vcmask 1043456
        %v338 = vsel %vm336, %v302, 0
        %340 = vmatprep.subr.mxu0 0.0
        %341 = vmatpush1.msra.mxu0 0.0
        %342 = vmatprep.subr.mxu0 0.0
        %343 = vmatpush1.msra.mxu0 0.0
        %344 = vmatprep.subr.mxu0 0.0
        %345 = vmatpush1.msra.mxu0 0.0
        %346 = vmatprep.subr.mxu0 0.0
        %347 = vmatpush1.msra.mxu0 0.0
        %348 = vmatprep.subr.mxu0 0.0
        %349 = vmatpush1.msra.mxu0 0.0
        %350 = vmatprep.subr.mxu0 0.0
        %351 = vmatpush1.msra.mxu0 0.0
        %352 = vmatprep.subr.mxu0 0.0
        %353 = vmatpush1.msra.mxu0 0.0
        %354 = vmatprep.subr.mxu0 0.0
        %355 = vmatpush1.msra.mxu0 0.0
        %356 = vmatprep.subr.mxu0 0.0
        %357 = vmatpush1.msra.mxu0 0.0
        %358 = vmatprep.subr.mxu0 0.0
        %359 = vmatpush1.msra.mxu0 0.0
        %360 = vmatprep.subr.mxu0 0.0
        %361 = vmatpush1.msra.mxu0 0.0
        %362 = vmatprep.subr.mxu0 0.0
        %363 = vmatpush1.msra.mxu0 0.0
        %364 = vmatprep.subr.mxu0 0.0
        %365 = vmatpush1.msra.mxu0 0.0
        %366 = vmatprep.subr.mxu0 0.0
        %367 = vmatpush1.msra.mxu0 0.0
        %368 = vmatprep.subr.mxu0 0.0
        %369 = vmatpush1.msra.mxu0 0.0
        %370 = vmatprep.subr.mxu0 0.0
        %371 = vmatpush1.msra.mxu0 %v338
        %372 = vmatprep.subr.mxu0 0.0
        %373 = vmatpush2.msra.mxu0 0.0
        %374 = vmatprep.subr.mxu0 0.0
        %375 = vmatpush2.msra.mxu0 0.0
        %376 = vmatprep.subr.mxu0 0.0
        %377 = vmatpush2.msra.mxu0 0.0
        %378 = vmatprep.subr.mxu0 0.0
        %379 = vmatpush2.msra.mxu0 0.0
        %380 = vmatprep.subr.mxu0 0.0
        %381 = vmatpush2.msra.mxu0 0.0
        %382 = vmatprep.subr.mxu0 0.0
        %383 = vmatpush2.msra.mxu0 0.0
        %384 = vmatprep.subr.mxu0 0.0
        %385 = vmatpush2.msra.mxu0 0.0
        %386 = vmatprep.subr.mxu0 0.0
        %387 = vmatpush2.msra.mxu0 0.0
        %388 = vmatprep.subr.mxu0 0.0
        %389 = vmatpush2.msra.mxu0 0.0
        %390 = vmatprep.subr.mxu0 0.0
        %391 = vmatpush2.msra.mxu0 0.0
        %392 = vmatprep.subr.mxu0 0.0
        %393 = vmatpush2.msra.mxu0 0.0
        %394 = vmatprep.subr.mxu0 0.0
        %395 = vmatpush2.msra.mxu0 0.0
        %396 = vmatprep.subr.mxu0 0.0
        %397 = vmatpush2.msra.mxu0 0.0
        %398 = vmatprep.subr.mxu0 0.0
        %399 = vmatpush2.msra.mxu0 0.0
        %400 = vmatprep.subr.mxu0 0.0
        %401 = vmatpush2.msra.mxu0 0.0
        %402 = vmatprep.subr.mxu0 0.0
        %403 = vmatpush2.msra.mxu0 0.0
        %404 = vmatprep.mubr.f32.mxu0 0.0
        %405 = vmatmul.mubr.f32.gmra.mxu0 %v325
        %v406 = vpop.f32.mrf.mxu0
        %v407 = vadd.f32 %v306, %v406
        %v408 = vpop.f32.mrf.mxu0
        %409 = vmatprep.mubr.f32.mxu0 0.0
        %410 = vmatmul.mubr.f32.gmra.mxu0 %v328
        %v411 = vpop.f32.mrf.mxu0
        %v412 = vadd.f32 %v311, %v411
        %v413 = vpop.f32.mrf.mxu0
        %414 = vmatprep.mubr.f32.mxu0 0.0
        %415 = vmatmul.mubr.f32.gmra.mxu0 %v331
        %v416 = vpop.f32.mrf.mxu0
        %v417 = vadd.f32 %v316, %v416
        %v418 = vpop.f32.mrf.mxu0
        %419 = vmatprep.mubr.f32.mxu0 0.0
        %420 = vmatmul.mubr.f32.gmra.mxu0 %v334
        %v421 = vpop.f32.mrf.mxu0
        %v422 = vadd.f32 %v321, %v421
        %v423 = vpop.f32.mrf.mxu0
        %424 = vdwg.mxu0
        %v425 = vmul.f32 %v407, 0.5
        %v426 = vmul.f32 %v412, 0.5
        %v427 = vmul.f32 %v417, 0.5
        %v428 = vmul.f32 %v422, 0.5
        %v429 = vtanh.pop %v425
        %v430 = vtanh.pop %v426
        %v431 = vtanh.pop %v427
        %v432 = vtanh.pop %v428
        %v433 = vadd.f32 %v429, 1.0
        %v434 = vadd.f32 %v430, 1.0
        %v435 = vadd.f32 %v431, 1.0
        %v436 = vadd.f32 %v432, 1.0
        %v437 = vmul.f32 %v433, 0.5
        %v438 = vmul.f32 %v434, 0.5
        %v439 = vmul.f32 %v435, 0.5
        %v440 = vmul.f32 %v436, 0.5
        %v441 = vmul.f32 %v407, %v437
        %v442 = vmul.f32 %v412, %v438
        %v443 = vmul.f32 %v417, %v439
        %v444 = vmul.f32 %v422, %v440
        %446 = vset.pattern.permute.xlu0 0
        %447 = vperm.xlu0 %446, %v293
        %v448 = vpop.permute.xlu0 %447
        %451 = vset.pattern.permute.xlu0 0
        %452 = vperm.xlu0 %451, %v294
        %v453 = vpop.permute.xlu0 %452
        %456 = vset.pattern.permute.xlu0 0
        %457 = vperm.xlu0 %456, %v295
        %v458 = vpop.permute.xlu0 %457
        %461 = vset.pattern.permute.xlu0 0
        %462 = vperm.xlu0 %461, %v296
        %v463 = vpop.permute.xlu0 %462
        %vm465 = vcmask 261120
        %v467 = vsel %vm465, %v289, 0
        %v470 = vsel %vm465, %v290, 0
        %v473 = vsel %vm465, %v291, 0
        %v476 = vsel %vm465, %v292, 0
        %478 = vmatprep.subr.mxu0 0.0
        %479 = vmatpush1.msra.mxu0 0.0
        %480 = vmatprep.subr.mxu0 0.0
        %481 = vmatpush1.msra.mxu0 0.0
        %482 = vmatprep.subr.mxu0 0.0
        %483 = vmatpush1.msra.mxu0 0.0
        %484 = vmatprep.subr.mxu0 0.0
        %485 = vmatpush1.msra.mxu0 0.0
        %486 = vmatprep.subr.mxu0 0.0
        %487 = vmatpush1.msra.mxu0 0.0
        %488 = vmatprep.subr.mxu0 0.0
        %489 = vmatpush1.msra.mxu0 0.0
        %490 = vmatprep.subr.mxu0 0.0
        %491 = vmatpush1.msra.mxu0 0.0
        %492 = vmatprep.subr.mxu0 0.0
        %493 = vmatpush1.msra.mxu0 0.0
        %494 = vmatprep.subr.mxu0 0.0
        %495 = vmatpush1.msra.mxu0 0.0
        %496 = vmatprep.subr.mxu0 0.0
        %497 = vmatpush1.msra.mxu0 0.0
        %498 = vmatprep.subr.mxu0 0.0
        %499 = vmatpush1.msra.mxu0 0.0
        %500 = vmatprep.subr.mxu0 0.0
        %501 = vmatpush1.msra.mxu0 0.0
        %502 = vmatprep.subr.mxu0 0.0
        %503 = vmatpush1.msra.mxu0 %v444
        %504 = vmatprep.subr.mxu0 0.0
        %505 = vmatpush1.msra.mxu0 %v443
        %506 = vmatprep.subr.mxu0 0.0
        %507 = vmatpush1.msra.mxu0 %v442
        %508 = vmatprep.subr.mxu0 0.0
        %509 = vmatpush1.msra.mxu0 %v441
        %510 = vmatprep.subr.mxu0 0.0
        %511 = vmatpush2.msra.mxu0 0.0
        %512 = vmatprep.subr.mxu0 0.0
        %513 = vmatpush2.msra.mxu0 0.0
        %514 = vmatprep.subr.mxu0 0.0
        %515 = vmatpush2.msra.mxu0 0.0
        %516 = vmatprep.subr.mxu0 0.0
        %517 = vmatpush2.msra.mxu0 0.0
        %518 = vmatprep.subr.mxu0 0.0
        %519 = vmatpush2.msra.mxu0 0.0
        %520 = vmatprep.subr.mxu0 0.0
        %521 = vmatpush2.msra.mxu0 0.0
        %522 = vmatprep.subr.mxu0 0.0
        %523 = vmatpush2.msra.mxu0 0.0
        %524 = vmatprep.subr.mxu0 0.0
        %525 = vmatpush2.msra.mxu0 0.0
        %526 = vmatprep.subr.mxu0 0.0
        %527 = vmatpush2.msra.mxu0 0.0
        %528 = vmatprep.subr.mxu0 0.0
        %529 = vmatpush2.msra.mxu0 0.0
        %530 = vmatprep.subr.mxu0 0.0
        %531 = vmatpush2.msra.mxu0 0.0
        %532 = vmatprep.subr.mxu0 0.0
        %533 = vmatpush2.msra.mxu0 0.0
        %534 = vmatprep.subr.mxu0 0.0
        %535 = vmatpush2.msra.mxu0 0.0
        %536 = vmatprep.subr.mxu0 0.0
        %537 = vmatpush2.msra.mxu0 0.0
        %538 = vmatprep.subr.mxu0 0.0
        %539 = vmatpush2.msra.mxu0 0.0
        %540 = vmatprep.subr.mxu0 0.0
        %541 = vmatpush2.msra.mxu0 0.0
        %542 = vmatprep.mubr.f32.mxu0 0.0
        %543 = vmatmul.mubr.f32.gmra.mxu0 %v467
        %v544 = vpop.f32.mrf.mxu0
        %v545 = vadd.f32 %v448, %v544
        %v546 = vpop.f32.mrf.mxu0
        %547 = vmatprep.mubr.f32.mxu0 0.0
        %548 = vmatmul.mubr.f32.gmra.mxu0 %v470
        %v549 = vpop.f32.mrf.mxu0
        %v550 = vadd.f32 %v453, %v549
        %v551 = vpop.f32.mrf.mxu0
        %552 = vmatprep.mubr.f32.mxu0 0.0
        %553 = vmatmul.mubr.f32.gmra.mxu0 %v473
        %v554 = vpop.f32.mrf.mxu0
        %v555 = vadd.f32 %v458, %v554
        %v556 = vpop.f32.mrf.mxu0
        %557 = vmatprep.mubr.f32.mxu0 0.0
        %558 = vmatmul.mubr.f32.gmra.mxu0 %v476
        %v559 = vpop.f32.mrf.mxu0
        %v560 = vadd.f32 %v463, %v559
        %v561 = vpop.f32.mrf.mxu0
        %562 = vdwg.mxu0
        %v563 = vmul.f32 %v545, 0.5
        %v564 = vmul.f32 %v550, 0.5
        %v565 = vmul.f32 %v555, 0.5
        %v566 = vmul.f32 %v560, 0.5
        %v567 = vtanh.pop %v563
        %v568 = vtanh.pop %v564
        %v569 = vtanh.pop %v565
        %v570 = vtanh.pop %v566
        %v571 = vadd.f32 %v567, 1.0
        %v572 = vadd.f32 %v568, 1.0
        %v573 = vadd.f32 %v569, 1.0
        %v574 = vadd.f32 %v570, 1.0
        %v575 = vmul.f32 %v571, 0.5
        %v576 = vmul.f32 %v572, 0.5
        %v577 = vmul.f32 %v573, 0.5
        %v578 = vmul.f32 %v574, 0.5
        %v579 = vmul.f32 %v545, %v575
        %v580 = vmul.f32 %v550, %v576
        %v581 = vmul.f32 %v555, %v577
        %v582 = vmul.f32 %v560, %v578
        %584 = vset.pattern.permute.xlu0 0
        %585 = vperm.xlu0 %584, %v297
        %v586 = vpop.permute.xlu0 %585
        %589 = vset.pattern.permute.xlu0 0
        %590 = vperm.xlu0 %589, %v298
        %v591 = vpop.permute.xlu0 %590
        %594 = vset.pattern.permute.xlu0 0
        %595 = vperm.xlu0 %594, %v299
        %v596 = vpop.permute.xlu0 %595
        %599 = vset.pattern.permute.xlu0 0
        %600 = vperm.xlu0 %599, %v300
        %v601 = vpop.permute.xlu0 %600
        %v603 = vmul.f32 %v586, %v579
        %v604 = vmul.f32 %v591, %v580
        %v605 = vmul.f32 %v596, %v581
        %v606 = vmul.f32 %v601, %v582
        %v607 = vadd.f32 %v603, %v604
        %v608 = vadd.f32 %v607, %v605
        %v609 = vadd.f32 %v608, %v606
        %v610 = vrot.slane %v609, 4
        %v611 = vadd.f32 %v609, %v610
        %v612 = vrot.slane %v611, 2
        %v613 = vadd.f32 %v611, %v612
        %v614 = vrot.slane %v613, 1
        %v615 = vadd.f32 %v613, %v614
        %v616 = vstv %s301
        %v617 = vadd.f32 %v615, %v616
        %v618 = vmul.f32 %v617, 0.5
        %v619 = vtanh.pop %v618
        %v620 = vadd.f32 %v619, 1.0
        %v621 = vmul.f32 %v620, 0.5
        %v622 = vmul.f32 %v621, 0.9
        %v623 = vadd.f32 %v622, 0.1
        %v624 = vmul.f32 %v302, %v623
        %v625 = vlaneseq
        %vm626 = vcmp.ge.s32.totalorder %v625, 0
        %vm627 = vcmp.lt.s32.totalorder %v625, 128
        %vm628 = vmand %vm626, %vm627
        %629 = vst.msk [vmem:[%s273] sm:$0x1] %vm628, %v624
        %s630 = scalar_lea.vmem %s278, 4
        %v631 = vld [vmem:[%s630] sm:$0xf]
        %v633 = vsel %vm336, %v631, 0
        %635 = vmatprep.subr.mxu0 0.0
        %636 = vmatpush1.msra.mxu0 0.0
        %637 = vmatprep.subr.mxu0 0.0
        %638 = vmatpush1.msra.mxu0 0.0
        %639 = vmatprep.subr.mxu0 0.0
        %640 = vmatpush1.msra.mxu0 0.0
        %641 = vmatprep.subr.mxu0 0.0
        %642 = vmatpush1.msra.mxu0 0.0
        %643 = vmatprep.subr.mxu0 0.0
        %644 = vmatpush1.msra.mxu0 0.0
        %645 = vmatprep.subr.mxu0 0.0
        %646 = vmatpush1.msra.mxu0 0.0
        %647 = vmatprep.subr.mxu0 0.0
        %648 = vmatpush1.msra.mxu0 0.0
        %649 = vmatprep.subr.mxu0 0.0
        %650 = vmatpush1.msra.mxu0 0.0
        %651 = vmatprep.subr.mxu0 0.0
        %652 = vmatpush1.msra.mxu0 0.0
        %653 = vmatprep.subr.mxu0 0.0
        %654 = vmatpush1.msra.mxu0 0.0
        %655 = vmatprep.subr.mxu0 0.0
        %656 = vmatpush1.msra.mxu0 0.0
        %657 = vmatprep.subr.mxu0 0.0
        %658 = vmatpush1.msra.mxu0 0.0
        %659 = vmatprep.subr.mxu0 0.0
        %660 = vmatpush1.msra.mxu0 0.0
        %661 = vmatprep.subr.mxu0 0.0
        %662 = vmatpush1.msra.mxu0 0.0
        %663 = vmatprep.subr.mxu0 0.0
        %664 = vmatpush1.msra.mxu0 0.0
        %665 = vmatprep.subr.mxu0 0.0
        %666 = vmatpush1.msra.mxu0 %v633
        %667 = vmatprep.subr.mxu0 0.0
        %668 = vmatpush2.msra.mxu0 0.0
        %669 = vmatprep.subr.mxu0 0.0
        %670 = vmatpush2.msra.mxu0 0.0
        %671 = vmatprep.subr.mxu0 0.0
        %672 = vmatpush2.msra.mxu0 0.0
        %673 = vmatprep.subr.mxu0 0.0
        %674 = vmatpush2.msra.mxu0 0.0
        %675 = vmatprep.subr.mxu0 0.0
        %676 = vmatpush2.msra.mxu0 0.0
        %677 = vmatprep.subr.mxu0 0.0
        %678 = vmatpush2.msra.mxu0 0.0
        %679 = vmatprep.subr.mxu0 0.0
        %680 = vmatpush2.msra.mxu0 0.0
        %681 = vmatprep.subr.mxu0 0.0
        %682 = vmatpush2.msra.mxu0 0.0
        %683 = vmatprep.subr.mxu0 0.0
        %684 = vmatpush2.msra.mxu0 0.0
        %685 = vmatprep.subr.mxu0 0.0
        %686 = vmatpush2.msra.mxu0 0.0
        %687 = vmatprep.subr.mxu0 0.0
        %688 = vmatpush2.msra.mxu0 0.0
        %689 = vmatprep.subr.mxu0 0.0
        %690 = vmatpush2.msra.mxu0 0.0
        %691 = vmatprep.subr.mxu0 0.0
        %692 = vmatpush2.msra.mxu0 0.0
        %693 = vmatprep.subr.mxu0 0.0
        %694 = vmatpush2.msra.mxu0 0.0
        %695 = vmatprep.subr.mxu0 0.0
        %696 = vmatpush2.msra.mxu0 0.0
        %697 = vmatprep.subr.mxu0 0.0
        %698 = vmatpush2.msra.mxu0 0.0
        %699 = vmatprep.mubr.f32.mxu0 0.0
        %700 = vmatmul.mubr.f32.gmra.mxu0 %v325
        %v701 = vpop.f32.mrf.mxu0
        %v702 = vadd.f32 %v306, %v701
        %v703 = vpop.f32.mrf.mxu0
        %704 = vmatprep.mubr.f32.mxu0 0.0
        %705 = vmatmul.mubr.f32.gmra.mxu0 %v328
        %v706 = vpop.f32.mrf.mxu0
        %v707 = vadd.f32 %v311, %v706
        %v708 = vpop.f32.mrf.mxu0
        %709 = vmatprep.mubr.f32.mxu0 0.0
        %710 = vmatmul.mubr.f32.gmra.mxu0 %v331
        %v711 = vpop.f32.mrf.mxu0
        %v712 = vadd.f32 %v316, %v711
        %v713 = vpop.f32.mrf.mxu0
        %714 = vmatprep.mubr.f32.mxu0 0.0
        %715 = vmatmul.mubr.f32.gmra.mxu0 %v334
        %v716 = vpop.f32.mrf.mxu0
        %v717 = vadd.f32 %v321, %v716
        %v718 = vpop.f32.mrf.mxu0
        %719 = vdwg.mxu0
        %v720 = vmul.f32 %v702, 0.5
        %v721 = vmul.f32 %v707, 0.5
        %v722 = vmul.f32 %v712, 0.5
        %v723 = vmul.f32 %v717, 0.5
        %v724 = vtanh.pop %v720
        %v725 = vtanh.pop %v721
        %v726 = vtanh.pop %v722
        %v727 = vtanh.pop %v723
        %v728 = vadd.f32 %v724, 1.0
        %v729 = vadd.f32 %v725, 1.0
        %v730 = vadd.f32 %v726, 1.0
        %v731 = vadd.f32 %v727, 1.0
        %v732 = vmul.f32 %v728, 0.5
        %v733 = vmul.f32 %v729, 0.5
        %v734 = vmul.f32 %v730, 0.5
        %v735 = vmul.f32 %v731, 0.5
        %v736 = vmul.f32 %v702, %v732
        %v737 = vmul.f32 %v707, %v733
        %v738 = vmul.f32 %v712, %v734
        %v739 = vmul.f32 %v717, %v735
        %740 = vmatprep.subr.mxu0 0.0
        %741 = vmatpush1.msra.mxu0 0.0
        %742 = vmatprep.subr.mxu0 0.0
        %743 = vmatpush1.msra.mxu0 0.0
        %744 = vmatprep.subr.mxu0 0.0
        %745 = vmatpush1.msra.mxu0 0.0
        %746 = vmatprep.subr.mxu0 0.0
        %747 = vmatpush1.msra.mxu0 0.0
        %748 = vmatprep.subr.mxu0 0.0
        %749 = vmatpush1.msra.mxu0 0.0
        %750 = vmatprep.subr.mxu0 0.0
        %751 = vmatpush1.msra.mxu0 0.0
        %752 = vmatprep.subr.mxu0 0.0
        %753 = vmatpush1.msra.mxu0 0.0
        %754 = vmatprep.subr.mxu0 0.0
        %755 = vmatpush1.msra.mxu0 0.0
        %756 = vmatprep.subr.mxu0 0.0
        %757 = vmatpush1.msra.mxu0 0.0
        %758 = vmatprep.subr.mxu0 0.0
        %759 = vmatpush1.msra.mxu0 0.0
        %760 = vmatprep.subr.mxu0 0.0
        %761 = vmatpush1.msra.mxu0 0.0
        %762 = vmatprep.subr.mxu0 0.0
        %763 = vmatpush1.msra.mxu0 0.0
        %764 = vmatprep.subr.mxu0 0.0
        %765 = vmatpush1.msra.mxu0 %v739
        %766 = vmatprep.subr.mxu0 0.0
        %767 = vmatpush1.msra.mxu0 %v738
        %768 = vmatprep.subr.mxu0 0.0
        %769 = vmatpush1.msra.mxu0 %v737
        %770 = vmatprep.subr.mxu0 0.0
        %771 = vmatpush1.msra.mxu0 %v736
        %772 = vmatprep.subr.mxu0 0.0
        %773 = vmatpush2.msra.mxu0 0.0
        %774 = vmatprep.subr.mxu0 0.0
        %775 = vmatpush2.msra.mxu0 0.0
        %776 = vmatprep.subr.mxu0 0.0
        %777 = vmatpush2.msra.mxu0 0.0
        %778 = vmatprep.subr.mxu0 0.0
        %779 = vmatpush2.msra.mxu0 0.0
        %780 = vmatprep.subr.mxu0 0.0
        %781 = vmatpush2.msra.mxu0 0.0
        %782 = vmatprep.subr.mxu0 0.0
        %783 = vmatpush2.msra.mxu0 0.0
        %784 = vmatprep.subr.mxu0 0.0
        %785 = vmatpush2.msra.mxu0 0.0
        %786 = vmatprep.subr.mxu0 0.0
        %787 = vmatpush2.msra.mxu0 0.0
        %788 = vmatprep.subr.mxu0 0.0
        %789 = vmatpush2.msra.mxu0 0.0
        %790 = vmatprep.subr.mxu0 0.0
        %791 = vmatpush2.msra.mxu0 0.0
        %792 = vmatprep.subr.mxu0 0.0
        %793 = vmatpush2.msra.mxu0 0.0
        %794 = vmatprep.subr.mxu0 0.0
        %795 = vmatpush2.msra.mxu0 0.0
        %796 = vmatprep.subr.mxu0 0.0
        %797 = vmatpush2.msra.mxu0 0.0
        %798 = vmatprep.subr.mxu0 0.0
        %799 = vmatpush2.msra.mxu0 0.0
        %800 = vmatprep.subr.mxu0 0.0
        %801 = vmatpush2.msra.mxu0 0.0
        %802 = vmatprep.subr.mxu0 0.0
        %803 = vmatpush2.msra.mxu0 0.0
        %804 = vmatprep.mubr.f32.mxu0 0.0
        %805 = vmatmul.mubr.f32.gmra.mxu0 %v467
        %v806 = vpop.f32.mrf.mxu0
        %v807 = vadd.f32 %v448, %v806
        %v808 = vpop.f32.mrf.mxu0
        %809 = vmatprep.mubr.f32.mxu0 0.0
        %810 = vmatmul.mubr.f32.gmra.mxu0 %v470
        %v811 = vpop.f32.mrf.mxu0
        %v812 = vadd.f32 %v453, %v811
        %v813 = vpop.f32.mrf.mxu0
        %814 = vmatprep.mubr.f32.mxu0 0.0
        %815 = vmatmul.mubr.f32.gmra.mxu0 %v473
        %v816 = vpop.f32.mrf.mxu0
        %v817 = vadd.f32 %v458, %v816
        %v818 = vpop.f32.mrf.mxu0
        %819 = vmatprep.mubr.f32.mxu0 0.0
        %820 = vmatmul.mubr.f32.gmra.mxu0 %v476
        %v821 = vpop.f32.mrf.mxu0
        %v822 = vadd.f32 %v463, %v821
        %v823 = vpop.f32.mrf.mxu0
        %824 = vdwg.mxu0
        %v825 = vmul.f32 %v807, 0.5
        %v826 = vmul.f32 %v812, 0.5
        %v827 = vmul.f32 %v817, 0.5
        %v828 = vmul.f32 %v822, 0.5
        %v829 = vtanh.pop %v825
        %v830 = vtanh.pop %v826
        %v831 = vtanh.pop %v827
        %v832 = vtanh.pop %v828
        %v833 = vadd.f32 %v829, 1.0
        %v834 = vadd.f32 %v830, 1.0
        %v835 = vadd.f32 %v831, 1.0
        %v836 = vadd.f32 %v832, 1.0
        %v837 = vmul.f32 %v833, 0.5
        %v838 = vmul.f32 %v834, 0.5
        %v839 = vmul.f32 %v835, 0.5
        %v840 = vmul.f32 %v836, 0.5
        %v841 = vmul.f32 %v807, %v837
        %v842 = vmul.f32 %v812, %v838
        %v843 = vmul.f32 %v817, %v839
        %v844 = vmul.f32 %v822, %v840
        %v845 = vmul.f32 %v586, %v841
        %v846 = vmul.f32 %v591, %v842
        %v847 = vmul.f32 %v596, %v843
        %v848 = vmul.f32 %v601, %v844
        %v849 = vadd.f32 %v845, %v846
        %v850 = vadd.f32 %v849, %v847
        %v851 = vadd.f32 %v850, %v848
        %v852 = vrot.slane %v851, 4
        %v853 = vadd.f32 %v851, %v852
        %v854 = vrot.slane %v853, 2
        %v855 = vadd.f32 %v853, %v854
        %v856 = vrot.slane %v855, 1
        %v857 = vadd.f32 %v855, %v856
        %v858 = vadd.f32 %v857, %v616
        %v859 = vmul.f32 %v858, 0.5
        %v860 = vtanh.pop %v859
        %v861 = vadd.f32 %v860, 1.0
        %v862 = vmul.f32 %v861, 0.5
        %v863 = vmul.f32 %v862, 0.9
        %v864 = vadd.f32 %v863, 0.1
        %v865 = vmul.f32 %v631, %v864
        %s866 = scalar_lea.vmem %s273, 1 [#allocation3]
        %867 = vst.msk [vmem:[%s866] sm:$0x1] %vm628, %v865
        %s868 = sand.u32 %s182, 1
        %s869 = scalar_lea.sflag [#allocation4], %s868
        %s870 = sand.u32 %s182, 1
        %s871 = smul.addr %s870, 2
        %s872 = scalar_lea.vmem [#allocation3], %s871
        // Predicated region
        $region49: #{tpu_custom_call.1} parent=47 // pred_check
          %p873 = pneg %p192
        $region50: #{tpu_custom_call.1} parent=47 // pred_check_branch
          %875 = sbr.rel (%p873) target = $region52
        $region51: #{tpu_custom_call.1} parent=47 // pred_region
          %s876 = smul.u32 2, %s22
          %s878 = ssub.s32 32, 32
          %879 = vsyncadd %s869, %s878
          %s880 = smul.addr %s876, 16
          %s881 = scalar_lea.hbm %s7, %s880
          %s883 = sshll.u32 %s872, 4
          %s884 = int_to_ptr.vmem [resolvable:$true] %s883
          %886 = dma.vmem_to_hbm [thread:$0]  %s884, 32, %s881, %s869
        $region52: #{tpu_custom_call.1} parent=47 // pred_fallthru
          _
      $region48: #{tpu_custom_call.1} parent=5 // pred_fallthru
        _
      %p887 = scmp.le.s32.totalorder 2, %s17
      // Predicated region
      $region53: #{tpu_custom_call.1} parent=5 // pred_check
        %p888 = pneg %p887
      $region54: #{tpu_custom_call.1} parent=5 // pred_check_branch
        %890 = sbr.rel (%p888) target = $region56
      $region55: #{tpu_custom_call.1} parent=5 // pred_region
        %s891 = ssub.s32 %s17, 2
        // Predicated region
        $region57: #{tpu_custom_call.1} parent=55 // pred_check
          %p892 = pneg %p198
        $region58: #{tpu_custom_call.1} parent=55 // pred_check_branch
          %894 = sbr.rel (%p892) target = $region60
        $region59: #{tpu_custom_call.1} parent=55 // pred_region
          %s895 = sand.u32 %s183, 1
          %s896 = scalar_lea.sflag [#allocation4], %s895
          %s897 = sand.u32 %s183, 1
          %s898 = smul.addr %s897, 2
          %s899 = scalar_lea.vmem [#allocation3], %s898
          %900 = dma.done %s896, 32
        $region60: #{tpu_custom_call.1} parent=55 // pred_fallthru
          _
      $region56: #{tpu_custom_call.1} parent=5 // pred_fallthru
        _
    $region6: #{tpu_custom_call.1} parent=1 // loop_footer
      %s21 = sadd.s32 1, %s17
    $region7: #{tpu_custom_call.1} parent=1 // loop_footer_branch
      %16 = sbr.rel target = $region3
    $region8: #{tpu_custom_call.1} parent=1 // loop_exit
      _
    %901 = vsyncpa [#allocation4], 1
    %s902 = scalar_lea.sflag [#allocation4], 1
    %903 = vsyncpa %s902, 1

</llo_original>
